<compile_context>
chip_gen: v5e
topology: v5e:2x2
jax: 0.10.0
libtpu: 0.0.40
codegen_flags: <defaults>
</compile_context>

<pallas_src>
import functools

import jax
import jax.numpy as jnp
from jax import lax
from jax.experimental import pallas as pl
from jax.experimental.pallas import tpu as pltpu

LANES = 128
_TARGET_BLOCK_ELEMS = 512 * 1024      # ~2 MiB f32 per input block


def _cdiv(a, b):
    return -(-a // b)


def _as_2d(a):
    """2-D (R, C) view with no padding and a layout-friendly reshape.

    total % 128 == 0 -> lane-dense (rows, 128); otherwise collapse only the
    leading dims so the native last dim stays on the lane axis (no pad copy).
    # TODO(synk): verify with xprof that the reshape lowers to a bitcast for
    # the common case (last dim already a multiple of 128); otherwise tile the
    # array fully in its native rank.
    """
    total = a.size
    if total % LANES == 0:
        return a.reshape(total // LANES, LANES)
    if a.ndim >= 2:
        return a.reshape(-1, a.shape[-1])
    return a.reshape(1, total)


def _choose_tiling(R, C):
    """Pick (tr, ncores, steps) for a (R, C) slab.  No padding is introduced:
    the grid may be non-divisible and only the last block can be partial."""
    if R * C <= _TARGET_BLOCK_ELEMS or R <= 8:
        return R, 1, 1                      # single full-array block
    tr = max(8, min(R, _TARGET_BLOCK_ELEMS // max(C, 1)) // 8 * 8)
    # Prefer a tr giving an EVEN number of blocks so the leading "parallel"
    # axis can split 2-way across TensorCores (v7x megacore).
    best = None
    t = tr
    for _ in range(16):
        if t < 8:
            break
        if _cdiv(R, t) % 2 == 0:
            best = t
            break
        t -= 8
    if best is not None:
        tr = best
        ncores = 2
    else:
        ncores = 1
    nblocks = _cdiv(R, tr)
    steps = nblocks // ncores
    return tr, ncores, steps


def _focal_loss_kernel(x_ref, y_ref, out_ref, acc_ref, *,
                       alpha, gamma, valid_rows_last, masked):
    c = pl.program_id(0)        # parallel axis: one partial sum per core
    i = pl.program_id(1)        # reduction axis

    @pl.when(i == 0)
    def _init():
        acc_ref[...] = jnp.zeros_like(acc_ref)

    x = x_ref[...].astype(jnp.float32)
    y = y_ref[...].astype(jnp.float32)

    # Numerically stable BCE-with-logits pieces, VALU-lean (no divide, no
    # selects); 3 EUP ops per element: exp, log1p, exp.
    log1p_e = jnp.log1p(jnp.exp(-jnp.abs(x)))
    log_probs = jnp.minimum(x, 0.0) - log1p_e        # log sigmoid(x)
    log_1_probs = log_probs - x                      # log sigmoid(-x) = log(1-p)
    probs = jnp.exp(log_probs)                       # sigmoid(x)

    ad = jnp.abs(y - probs)
    g = float(gamma)
    if g == 2.0:                                     # default: pure VPU
        coeff = -(ad * ad)
    elif g == 1.0:
        coeff = -ad
    elif g.is_integer() and 1.0 < g <= 8.0:          # small integer gamma
        p = ad * ad
        for _ in range(int(g) - 2):
            p = p * ad
        coeff = -p
    else:                                            # general gamma: guarded pow
        safe = jnp.maximum(ad, jnp.float32(1e-30))
        coeff = -jnp.where(ad > 0.0,
                           jnp.exp(jnp.float32(g) * jnp.log(safe)),
                           jnp.float32(0.0))

    a1 = jnp.float32(alpha)
    a0 = jnp.float32(1.0 - alpha)
    loss = (y * a1 * log_probs + (1.0 - y) * a0 * log_1_probs) * coeff

    if masked:
        # Only the global last block is partial; keep the hot path unmasked.
        is_last = jnp.logical_and(c == pl.num_programs(0) - 1,
                                  i == pl.num_programs(1) - 1)

        @pl.when(jnp.logical_not(is_last))
        def _hot():
            acc_ref[...] += loss

        @pl.when(is_last)
        def _tail():
            row = lax.broadcasted_iota(jnp.int32, loss.shape, 0)
            acc_ref[...] += jnp.where(row < valid_rows_last, loss, 0.0)
    else:
        acc_ref[...] += loss

    @pl.when(i == pl.num_programs(1) - 1)
    def _finalize():
        out_ref[0, 0] = jnp.sum(acc_ref[...])        # one XLU reduce per core


def focal_loss(logits, label, alpha=0.25, gamma=2.0, reduction="mean"):
    """Pallas TPU implementation of FocalLoss.forward (reduction='mean'/'sum').

    Inputs are consumed at their incoming dtype (bf16 logits / bf16|int8
    labels halve HBM traffic on HBM-bound v5e); the kernel upcasts internally.
    """
    assert logits.shape == label.shape
    # TODO(synk): reduction='none' (elementwise output) not wired up here.
    assert reduction in ("mean", "sum")

    total = 1
    for d in logits.shape:
        total *= int(d)
    assert total > 0

    x2 = _as_2d(logits)
    y2 = _as_2d(label)
    R, C = map(int, x2.shape)

    tr, ncores, steps = _choose_tiling(R, C)
    nblocks = ncores * steps
    masked = (R % tr) != 0                       # only possible when nblocks > 1
    valid_rows_last = R - (nblocks - 1) * tr

    kernel = functools.partial(
        _focal_loss_kernel, alpha=float(alpha), gamma=float(gamma),
        valid_rows_last=valid_rows_last, masked=masked)

    # Explicit scoped-VMEM budget: 2 inputs x 2 buffers x block + f32 acc.
    block_in_bytes = tr * C * (x2.dtype.itemsize + y2.dtype.itemsize)
    vmem_need = 2 * block_in_bytes + tr * C * 4 + (2 << 20)
    vmem_limit = int(min(max(vmem_need, 16 << 20), 64 << 20))

    cost = pl.CostEstimate(
        flops=18 * total,
        transcendentals=3 * total,
        bytes_accessed=total * (x2.dtype.itemsize + y2.dtype.itemsize) + 4 * ncores)

    partials = pl.pallas_call(
        kernel,
        out_shape=jax.ShapeDtypeStruct((ncores, 1), jnp.float32),
        grid_spec=pltpu.PrefetchScalarGridSpec(
            num_scalar_prefetch=0,
            grid=(ncores, steps),
            in_specs=[
                pl.BlockSpec((tr, C), lambda c, i: (c * steps + i, 0)),
                pl.BlockSpec((tr, C), lambda c, i: (c * steps + i, 0)),
            ],
            out_specs=pl.BlockSpec((1, 1), lambda c, i: (c, 0),
                                   memory_space=pltpu.MemorySpace.SMEM),
            scratch_shapes=[pltpu.VMEM((tr, C), jnp.float32)],
        ),
        compiler_params=pltpu.CompilerParams(
            dimension_semantics=("parallel", "arbitrary"),
            vmem_limit_bytes=vmem_limit),
        cost_estimate=cost,
    )(x2, y2)

    total_sum = jnp.sum(partials)
    if reduction == "mean":
        return total_sum / jnp.float32(total)
    return total_sum


def _focal_loss_ref(logits, label, alpha=0.25, gamma=2.0, reduction="mean"):
    x = logits.astype(jnp.float32)
    y = label.astype(jnp.float32)
    probs = jax.nn.sigmoid(x)
    coeff = -jnp.abs(y - probs) ** gamma
    log_probs = jax.nn.log_sigmoid(x)
    log_1_probs = jax.nn.log_sigmoid(-x)
    loss = (y * alpha * log_probs + (1.0 - y) * (1.0 - alpha) * log_1_probs) * coeff
    return jnp.mean(loss) if reduction == "mean" else jnp.sum(loss)


if __name__ == "__main__":
    key = jax.random.PRNGKey(0)
    k1, k2, k3, k4, k5, k6 = jax.random.split(key, 6)

    # Primary check: NCHW shape, lane-dense single-block path.
    N, C_, H, W = 2, 4, 16, 16
    logits = jax.random.normal(k1, (N, C_, H, W), dtype=jnp.float32)
    label = jax.random.bernoulli(k2, 0.5, (N, C_, H, W)).astype(jnp.float32)
    out = focal_loss(logits, label, alpha=0.25, gamma=2.0, reduction="mean")
    out = jax.block_until_ready(out)
    ref = _focal_loss_ref(logits, label, alpha=0.25, gamma=2.0)
    assert jnp.allclose(out, ref, rtol=1e-5, atol=1e-6), (out, ref)

    # Ragged total (not a multiple of 128): leading-dim collapse path, no pad.
    shape2 = (2, 3, 15, 17)
    logits2 = jax.random.normal(k3, shape2, dtype=jnp.float32)
    label2 = jax.random.bernoulli(k4, 0.5, shape2).astype(jnp.float32)
    out2 = focal_loss(logits2, label2, alpha=0.25, gamma=2.0, reduction="sum")
    out2 = jax.block_until_ready(out2)
    ref2 = _focal_loss_ref(logits2, label2, alpha=0.25, gamma=2.0, reduction="sum")
    assert jnp.allclose(out2, ref2, rtol=2e-5, atol=1e-5), (out2, ref2)

    # Multi-block path: 2-way core split + partial (masked) last block.
    shape3 = (1, 1, 5000, 128)
    logits3 = jax.random.normal(k5, shape3, dtype=jnp.float32)
    label3 = jax.random.bernoulli(k6, 0.5, shape3).astype(jnp.float32)
    out3 = focal_loss(logits3, label3, alpha=0.25, gamma=2.0, reduction="mean")
    out3 = jax.block_until_ready(out3)
    ref3 = _focal_loss_ref(logits3, label3, alpha=0.25, gamma=2.0, reduction="mean")
    assert jnp.allclose(out3, ref3, rtol=1e-4, atol=1e-6), (out3, ref3)

    print("KERNEL_OK")
</pallas_src>

<mosaic_0001>
module attributes {stable_mosaic.version = 11 : i64} {
  func.func @_focal_loss_kernel(%arg0: i32, %arg1: i32, %arg2: memref<16x128xf32, #tpu.memory_space<vmem>>, %arg3: memref<16x128xf32, #tpu.memory_space<vmem>>, %arg4: memref<1x1xf32, #tpu.memory_space<smem>>, %arg5: memref<16x128xf32, #tpu.memory_space<vmem>>) attributes {dimension_semantics = [#tpu.dimension_semantics<parallel>, #tpu.dimension_semantics<arbitrary>], iteration_bounds = array<i64: 1, 1>, scalar_prefetch = 0 : i64, scratch_operands = 1 : i64, tpu.core_type = #tpu.core_type<tc>, window_params = [{transform_indices = @transform_0, window_bounds = array<i64: 16, 128>}, {transform_indices = @transform_1, window_bounds = array<i64: 16, 128>}, {transform_indices = @transform_2, window_bounds = array<i64: 1, 1>}]} {
    %c0_i32 = arith.constant 0 : i32
    %0 = arith.cmpi eq, %arg1, %c0_i32 : i32
    %1 = arith.extui %0 : i1 to i32
    %c0_i32_0 = arith.constant 0 : i32
    %2 = arith.cmpi ne, %1, %c0_i32_0 : i32
    scf.if %2 {
      %cst_15 = arith.constant 0.000000e+00 : f32
      %36 = vector.broadcast %cst_15 : f32 to vector<16x128xf32>
      %c0_16 = arith.constant 0 : index
      %c0_17 = arith.constant 0 : index
      %37 = vector.load %arg5[%c0_16, %c0_17] : memref<16x128xf32, #tpu.memory_space<vmem>>, vector<16x128xf32>
      tpu.vector_store %arg5[%c0_16, %c0_17], %36 {strides = array<i32>} : memref<16x128xf32, #tpu.memory_space<vmem>>, vector<16x128xf32>,
    } else {
    }
    %c0 = arith.constant 0 : index
    %c0_1 = arith.constant 0 : index
    %3 = vector.load %arg2[%c0, %c0_1] : memref<16x128xf32, #tpu.memory_space<vmem>>, vector<16x128xf32>
    %c0_2 = arith.constant 0 : index
    %c0_3 = arith.constant 0 : index
    %4 = vector.load %arg3[%c0_2, %c0_3] : memref<16x128xf32, #tpu.memory_space<vmem>>, vector<16x128xf32>
    %5 = math.absf %3 : vector<16x128xf32>
    %cst = arith.constant 0.000000e+00 : f32
    %6 = vector.broadcast %cst : f32 to vector<16x128xf32>
    %7 = arith.subf %6, %5 : vector<16x128xf32>
    %8 = math.exp %7 : vector<16x128xf32>
    %9 = math.log1p %8 : vector<16x128xf32>
    %cst_4 = arith.constant 0.000000e+00 : f32
    %10 = vector.broadcast %cst_4 : f32 to vector<16x128xf32>
    %11 = arith.minimumf %3, %10 : vector<16x128xf32>
    %12 = arith.subf %11, %9 : vector<16x128xf32>
    %13 = arith.subf %12, %3 : vector<16x128xf32>
    %14 = math.exp %12 : vector<16x128xf32>
    %15 = arith.subf %4, %14 : vector<16x128xf32>
    %16 = math.absf %15 : vector<16x128xf32>
    %17 = arith.mulf %16, %16 : vector<16x128xf32>
    %cst_5 = arith.constant 0.000000e+00 : f32
    %18 = vector.broadcast %cst_5 : f32 to vector<16x128xf32>
    %19 = arith.subf %18, %17 : vector<16x128xf32>
    %cst_6 = arith.constant 2.500000e-01 : f32
    %20 = vector.broadcast %cst_6 : f32 to vector<16x128xf32>
    %21 = arith.mulf %4, %20 : vector<16x128xf32>
    %22 = arith.mulf %21, %12 : vector<16x128xf32>
    %cst_7 = arith.constant 1.000000e+00 : f32
    %23 = vector.broadcast %cst_7 : f32 to vector<16x128xf32>
    %24 = arith.subf %23, %4 : vector<16x128xf32>
    %cst_8 = arith.constant 7.500000e-01 : f32
    %25 = vector.broadcast %cst_8 : f32 to vector<16x128xf32>
    %26 = arith.mulf %24, %25 : vector<16x128xf32>
    %27 = arith.mulf %26, %13 : vector<16x128xf32>
    %28 = arith.addf %22, %27 : vector<16x128xf32>
    %29 = arith.mulf %28, %19 : vector<16x128xf32>
    %c0_9 = arith.constant 0 : index
    %c0_10 = arith.constant 0 : index
    %30 = vector.load %arg5[%c0_9, %c0_10] : memref<16x128xf32, #tpu.memory_space<vmem>>, vector<16x128xf32>
    %31 = arith.addf %30, %29 : vector<16x128xf32>
    %c0_11 = arith.constant 0 : index
    %c0_12 = arith.constant 0 : index
    %32 = vector.load %arg5[%c0_11, %c0_12] : memref<16x128xf32, #tpu.memory_space<vmem>>, vector<16x128xf32>
    tpu.vector_store %arg5[%c0_11, %c0_12], %31 {strides = array<i32>} : memref<16x128xf32, #tpu.memory_space<vmem>>, vector<16x128xf32>,
    %c0_i32_13 = arith.constant 0 : i32
    %33 = arith.cmpi eq, %arg1, %c0_i32_13 : i32
    %34 = arith.extui %33 : i1 to i32
    %c0_i32_14 = arith.constant 0 : i32
    %35 = arith.cmpi ne, %34, %c0_i32_14 : i32
    scf.if %35 {
      %c0_15 = arith.constant 0 : index
      %c0_16 = arith.constant 0 : index
      %36 = vector.load %arg5[%c0_15, %c0_16] : memref<16x128xf32, #tpu.memory_space<vmem>>, vector<16x128xf32>
      %37 = vector.shape_cast %36 : vector<16x128xf32> to vector<1x16x128xf32>
      %cst_17 = arith.constant dense<0.000000e+00> : vector<1xf32>
      %38 = vector.multi_reduction <add>, %37, %cst_17 [1, 2] : vector<1x16x128xf32> to vector<1xf32>
      %39 = vector.shape_cast %38 : vector<1xf32> to vector<1x1x1xf32>
      %40 = vector.extract %39[0, 0, 0] : f32 from vector<1x1x1xf32>
      %c0_18 = arith.constant 0 : index
      %c0_19 = arith.constant 0 : index
      %41 = memref.load %arg4[%c0_18, %c0_19] : memref<1x1xf32, #tpu.memory_space<smem>>
      memref.store %40, %arg4[%c0_18, %c0_19] : memref<1x1xf32, #tpu.memory_space<smem>>
    } else {
    }
    return
  }
  func.func @transform_0(%arg0: i32, %arg1: i32) -> (i32, i32) {
    %c1_i32 = arith.constant 1 : i32
    %0 = arith.muli %arg0, %c1_i32 : i32
    %1 = arith.addi %0, %arg1 : i32
    %c0_i32 = arith.constant 0 : i32
    %c0_i32_0 = arith.constant 0 : i32
    return %1, %c0_i32 : i32, i32
  }
  func.func @transform_1(%arg0: i32, %arg1: i32) -> (i32, i32) {
    %c1_i32 = arith.constant 1 : i32
    %0 = arith.muli %arg0, %c1_i32 : i32
    %1 = arith.addi %0, %arg1 : i32
    %c0_i32 = arith.constant 0 : i32
    %c0_i32_0 = arith.constant 0 : i32
    return %1, %c0_i32 : i32, i32
  }
  func.func @transform_2(%arg0: i32, %arg1: i32) -> (i32, i32) {
    %c0_i32 = arith.constant 0 : i32
    %c0_i32_0 = arith.constant 0 : i32
    return %arg0, %c0_i32 : i32, i32
  }
}

</mosaic_0001>

<llo_original>
// kernel: tpu_custom_call.1
$region0: #{tpu_custom_call.1}
  #allocation0 [shape = 'u32[]', space=smem, size = 0x4, offset = 0x4, fixed_abs, tag = 'smem constant byte address 0x4 - core index']
  #allocation1 [shape = 'u32[72,128]{1,0:T(1,128)}', space=vmem, size = 0x9000, scoped, tag = 'internal scratch']
  #allocation2 [shape = 'f32[16,128]{1,0:T(8,128)}', space=vmem, size = 0x2000, scoped, tag = 'scratch operand']
  %s0 = inlined_call_operand.hbm [shape: f32[16,128], index: 0, kind: input, shape index: {}]
  %s1 = inlined_call_operand.hbm [shape: f32[16,128], index: 1, kind: input, shape index: {}]
  %s2 = inlined_call_operand.hbm [shape: f32[1,1], index: 2, kind: output, shape index: {}]
  %s3 = sld [smem:[#allocation0]]
  $region34: #{tpu_custom_call.1} parent=0
    _
  %s5 = ssub.s32 1, %s3
  %s6 = scalar_select 0, %s5, %s3
  $region1: #{tpu_custom_call.1} parent=0
    #allocation3 [shape = 'u8[8192]{0}', space=vmem, size = 0x2000, scoped, tag = 'input window, operand 0, single buffered']
    #allocation4 [shape = 's32[1]{0}', space=sflag, size = 0x4, scoped, tag = 'scoped memory for tpu_custom_call.1']
    #allocation5 [shape = 's32[1]{0}', space=sflag, size = 0x4, scoped, tag = 'scoped memory for tpu_custom_call.1']
    #allocation6 [shape = 'u8[8192]{0}', space=vmem, size = 0x2000, scoped, tag = 'input window, operand 1, single buffered']
    #allocation7 [shape = 's32[1]{0}', space=sflag, size = 0x4, scoped, tag = 'scoped memory for tpu_custom_call.1']
    #allocation8 [shape = 'u8[512]{0}', space=smem, size = 0x200, scoped, tag = 'output window, operand 0, single buffered']
    %7 = vsyncpa [#allocation4], 0
    %8 = vsyncpa [#allocation7], 0
    %9 = vsyncpa [#allocation5], 0
    // Predicated region
    $region2: #{tpu_custom_call.1} parent=1 // pred_check
      _
    $region3: #{tpu_custom_call.1} parent=1 // pred_check_branch
      %11 = sbr.rel (0) target = $region5
    $region4: #{tpu_custom_call.1} parent=1 // pred_region
      %s12 = sadd.s32 0, 0
      %s13 = smul.u32 2, %s12
      %15 = vsyncadd [#allocation4], 0
      %s16 = smul.addr %s13, 8
      %s17 = scalar_lea.hbm %s0, %s16
      %s18 = sshll.u32 %s17, 4
      %s19 = int_to_ptr.hbm [resolvable:$true] %s18
      %s20 = sshll.u32 [#allocation3], 4
      %s21 = int_to_ptr.vmem [resolvable:$true] %s20
      %26 = dma.hbm_to_vmem [thread:$0]  %s19, 256, %s21, [#allocation4], 128, 128, 8
    $region5: #{tpu_custom_call.1} parent=1 // pred_fallthru
      _
    // Predicated region
    $region6: #{tpu_custom_call.1} parent=1 // pred_check
      _
    $region7: #{tpu_custom_call.1} parent=1 // pred_check_branch
      %28 = sbr.rel (0) target = $region9
    $region8: #{tpu_custom_call.1} parent=1 // pred_region
      %s29 = sadd.s32 0, 0
      %s30 = smul.u32 2, %s29
      %32 = vsyncadd [#allocation7], 0
      %s33 = smul.addr %s30, 8
      %s34 = scalar_lea.hbm %s1, %s33
      %s35 = sshll.u32 %s34, 4
      %s36 = int_to_ptr.hbm [resolvable:$true] %s35
      %s37 = sshll.u32 [#allocation6], 4
      %s38 = int_to_ptr.vmem [resolvable:$true] %s37
      %43 = dma.hbm_to_vmem [thread:$0]  %s36, 256, %s38, [#allocation7], 128, 128, 8
    $region9: #{tpu_custom_call.1} parent=1 // pred_fallthru
      _
    // Predicated region
    $region10: #{tpu_custom_call.1} parent=1 // pred_check
      _
    $region11: #{tpu_custom_call.1} parent=1 // pred_check_branch
      %45 = sbr.rel (0) target = $region13
    $region12: #{tpu_custom_call.1} parent=1 // pred_region
      %47 = dma.done [#allocation4], 256
    $region13: #{tpu_custom_call.1} parent=1 // pred_fallthru
      _
    // Predicated region
    $region14: #{tpu_custom_call.1} parent=1 // pred_check
      _
    $region15: #{tpu_custom_call.1} parent=1 // pred_check_branch
      %49 = sbr.rel (0) target = $region17
    $region16: #{tpu_custom_call.1} parent=1 // pred_region
      %51 = dma.done [#allocation7], 256
    $region17: #{tpu_custom_call.1} parent=1 // pred_fallthru
      _
    %s52 = sadd.s32 0, 0
    %s53 = smul.u32 2, %s52
    %s54 = sadd.s32 0, 0
    %s55 = smul.u32 2, %s54
    %p56 = scmp.eq.s32.totalorder 0, 0
    // Predicated region
    $region18: #{tpu_custom_call.1} parent=1 // pred_check
      %p57 = pneg %p56
    $region19: #{tpu_custom_call.1} parent=1 // pred_check_branch
      %59 = sbr.rel (%p57) target = $region21
    $region20: #{tpu_custom_call.1} parent=1 // pred_region
      %60 = vst [vmem:[#allocation2] sm:$0xff] 0.0
      %61 = vst [vmem:[#allocation2 + $0x8] sm:$0xff] 0.0
    $region21: #{tpu_custom_call.1} parent=1 // pred_fallthru
      _
    %v62 = vld [vmem:[#allocation3] sm:$0xff]
    %v63 = vld [vmem:[#allocation3 + $0x8] sm:$0xff]
    %v64 = vld [vmem:[#allocation6] sm:$0xff]
    %v65 = vld [vmem:[#allocation6 + $0x8] sm:$0xff]
    %v66 = vand.u32 2147483647, %v62
    %v67 = vand.u32 2147483647, %v63
    %v68 = vsub.f32 0.0, %v66
    %v69 = vsub.f32 0.0, %v67
    %v70 = vmul.f32 %v68, 1.442695
    %v71 = vpow.pop %v70
    %v72 = vmul.f32 %v69, 1.442695
    %v73 = vpow.pop %v72
    %v74 = vadd.f32 %v71, 1.0
    %v75 = vlog2.pop %v74
    %v76 = vmul.f32 %v75, 0.6931472
    %v77 = vmul.f32 -0.5, %v71
    %v78 = vadd.f32 %v77, 1.0
    %v79 = vmul.f32 %v78, %v71
    %v80 = vand.u32 2147483647, %v71
    %vm81 = vcmp.lt.f32.partialorder %v80, 0.0004427343
    %v82 = vsel %vm81, %v79, %v76
    %v83 = vadd.f32 %v73, 1.0
    %v84 = vlog2.pop %v83
    %v85 = vmul.f32 %v84, 0.6931472
    %v86 = vmul.f32 -0.5, %v73
    %v87 = vadd.f32 %v86, 1.0
    %v88 = vmul.f32 %v87, %v73
    %v89 = vand.u32 2147483647, %v73
    %vm90 = vcmp.lt.f32.partialorder %v89, 0.0004427343
    %v91 = vsel %vm90, %v88, %v85
    %v92 = vmin.f32 %v62, 0.0
    %v93 = vmin.f32 %v63, 0.0
    %v94 = vsub.f32 %v92, %v82
    %v95 = vsub.f32 %v93, %v91
    %v96 = vsub.f32 %v94, %v62
    %v97 = vsub.f32 %v95, %v63
    %v98 = vmul.f32 %v94, 1.442695
    %v99 = vpow.pop %v98
    %v100 = vmul.f32 %v95, 1.442695
    %v101 = vpow.pop %v100
    %v102 = vsub.f32 %v64, %v99
    %v103 = vsub.f32 %v65, %v101
    %v104 = vand.u32 2147483647, %v102
    %v105 = vand.u32 2147483647, %v103
    %v106 = vmul.f32 %v104, %v104
    %v107 = vmul.f32 %v105, %v105
    %v108 = vsub.f32 0.0, %v106
    %v109 = vsub.f32 0.0, %v107
    %v110 = vmul.f32 %v64, 0.25
    %v111 = vmul.f32 %v65, 0.25
    %v112 = vmul.f32 %v110, %v94
    %v113 = vmul.f32 %v111, %v95
    %v114 = vsub.f32 1.0, %v64
    %v115 = vsub.f32 1.0, %v65
    %v116 = vmul.f32 %v114, 0.75
    %v117 = vmul.f32 %v115, 0.75
    %v118 = vmul.f32 %v116, %v96
    %v119 = vmul.f32 %v117, %v97
    %v120 = vadd.f32 %v112, %v118
    %v121 = vadd.f32 %v113, %v119
    %v122 = vmul.f32 %v120, %v108
    %v123 = vmul.f32 %v121, %v109
    %v124 = vld [vmem:[#allocation2] sm:$0xff]
    %v125 = vld [vmem:[#allocation2 + $0x8] sm:$0xff]
    %v126 = vadd.f32 %v124, %v122
    %v127 = vadd.f32 %v125, %v123
    %128 = vst [vmem:[#allocation2] sm:$0xff] %v126
    %129 = vst [vmem:[#allocation2 + $0x8] sm:$0xff] %v127
    // Predicated region
    $region22: #{tpu_custom_call.1} parent=1 // pred_check
      %p130 = pneg %p56
    $region23: #{tpu_custom_call.1} parent=1 // pred_check_branch
      %132 = sbr.rel (%p130) target = $region25
    $region24: #{tpu_custom_call.1} parent=1 // pred_region
      %v133 = vld [vmem:[#allocation2] sm:$0xff]
      %v134 = vld [vmem:[#allocation2 + $0x8] sm:$0xff]
      %v135 = vadd.f32 %v133, %v134
      %136 = vadd.xlane.f32.xlu0 %v135
      %v137 = vpop.xlane.xlu0 %136
      %v138 = vrot.slane %v137, 4
      %v139 = vadd.f32 %v137, %v138
      %v140 = vrot.slane %v139, 2
      %v141 = vadd.f32 %v139, %v140
      %v142 = vrot.slane %v141, 1
      %v143 = vadd.f32 %v141, %v142
      %s144 = vtos %v143
      %s145 = scalar_lea.smem [#allocation8], 0
      %146 = sst [smem:[%s145]] %s144
    $region25: #{tpu_custom_call.1} parent=1 // pred_fallthru
      _
    // Predicated region
    $region26: #{tpu_custom_call.1} parent=1 // pred_check
      _
    $region27: #{tpu_custom_call.1} parent=1 // pred_check_branch
      %148 = sbr.rel (0) target = $region29
    $region28: #{tpu_custom_call.1} parent=1 // pred_region
      %150 = vsyncadd [#allocation5], 0
      %s152 = sshll.u32 %s2, 4
      %s153 = int_to_ptr.hbm [resolvable:$true] %s152
      %155 = dma.smem_to_hbm [#allocation8], 16, %s153, [#allocation5]
    $region29: #{tpu_custom_call.1} parent=1 // pred_fallthru
      _
    // Predicated region
    $region30: #{tpu_custom_call.1} parent=1 // pred_check
      _
    $region31: #{tpu_custom_call.1} parent=1 // pred_check_branch
      %157 = sbr.rel (0) target = $region33
    $region32: #{tpu_custom_call.1} parent=1 // pred_region
      %159 = dma.done [#allocation5], 16
    $region33: #{tpu_custom_call.1} parent=1 // pred_fallthru
      _
    %160 = sfence
    %161 = vsyncpa [#allocation4], 1
    %162 = vsyncpa [#allocation7], 1
    %163 = vsyncpa [#allocation5], 1

</llo_original>
